<compile_context>
chip_gen: v7x
topology: tpu7x:2x2x1
jax: 0.10.0
libtpu: 0.0.40
codegen_flags: <defaults>
</compile_context>

<pallas_src>
import math

import jax
import jax.numpy as jnp
from jax.experimental import pallas as pl
from jax.experimental.pallas import tpu as pltpu

_LN_EPS = 1e-5          # nn.LayerNorm default
_MIN_GRID_STEPS = 8     # keep >= this many grid steps for large inputs (pipelining + megacore)


def _add_and_norm_kernel(x_ref, res_ref, gamma_ref, beta_ref, o_ref):
    # All stats in f32 for numerical parity with PyTorch's LayerNorm.
    x = x_ref[...].astype(jnp.float32)
    r = res_ref[...].astype(jnp.float32)
    s = x + r                                              # residual add (dropout = identity)
    # Single-sweep statistics: mean and E[s^2] together; var = E[s^2] - mean^2 (biased, as in
    # PyTorch LN). maximum(., 0) guards against tiny negative values from cancellation.
    mean = jnp.mean(s, axis=-1, keepdims=True)
    mean_sq = jnp.mean(s * s, axis=-1, keepdims=True)
    var = jnp.maximum(mean_sq - mean * mean, 0.0)
    inv = jax.lax.rsqrt(var + _LN_EPS)
    g = gamma_ref[...].astype(jnp.float32)
    b = beta_ref[...].astype(jnp.float32)
    o_ref[...] = ((s - mean) * inv * g + b).astype(o_ref.dtype)


def _default_vmem_budget_bytes():
    """Per-generation VMEM budget: ~96 MiB on 128 MiB chips (v5e/v6e), ~48 MiB on v7x."""
    cap = None
    try:
        cap = pltpu.get_tpu_info().vmem_capacity_bytes
    except Exception:
        cap = None
    if cap is None:
        return 48 << 20
    if cap >= (100 << 20):          # v5e / v6e: 128 MiB physical VMEM
        return 96 << 20
    return min(48 << 20, int(cap * 3) // 4)   # v7x: 64 MiB per TensorCore


def _choose_tile_rows(rows, hidden, dtype_bytes, vmem_budget_bytes, pack, in_buffers):
    """Pick the row-tile: ~4 MiB streamed blocks, under budget, never a 1-step grid for big inputs."""
    # Per-row pipeline footprint: x/residual at `in_buffers` depth + out double-buffered at input
    # dtype, plus ~3 f32-wide intermediates for the in-kernel LayerNorm math (s, s*s, y).
    bytes_per_row = hidden * ((2 * in_buffers + 2) * dtype_bytes + 3 * 4)
    usable = int(vmem_budget_bytes * 0.85)                 # headroom for params / scratch
    max_rows = max(pack, (usable // max(bytes_per_row, 1)) // pack * pack)
    # ~4 MiB per streamed array block amortizes per-grid-step overhead (mem-bound kernel).
    target_rows = max(pack, ((4 << 20) // (hidden * dtype_bytes)) // pack * pack)
    tile = min(max_rows, target_rows)
    # Never collapse to a single-block grid for non-trivial inputs: keep >= _MIN_GRID_STEPS
    # steps so DMA pipelining and TensorCore sharding stay active.
    if rows * hidden * dtype_bytes > (8 << 20) and (rows // _MIN_GRID_STEPS) >= pack:
        tile = min(tile, (rows // _MIN_GRID_STEPS) // pack * pack)
    if tile >= rows:
        return rows                                        # small input; full-dim is layout-legal
    return tile


def _make_row_spec(tile_rows, hidden, triple_buffer):
    index_map = lambda i: (i, 0)
    if triple_buffer and hasattr(pl, "Buffered"):
        try:
            return pl.BlockSpec((tile_rows, hidden), index_map, pipeline_mode=pl.Buffered(3))
        except TypeError:
            pass  # older API without pipeline_mode -> fall back to default double-buffering
    return pl.BlockSpec((tile_rows, hidden), index_map)


def add_and_norm(x1, residual, gamma, beta, *, tile_rows=None, vmem_budget_bytes=None):
    """x1, residual: (..., hidden); gamma, beta: (hidden,). Returns LayerNorm(x1 + residual)."""
    assert x1.shape == residual.shape
    orig_shape = x1.shape
    hidden = orig_shape[-1]
    rows = math.prod(orig_shape[:-1])
    dtype_bytes = jnp.dtype(x1.dtype).itemsize
    pack = max(8, 32 // dtype_bytes)                       # 8 f32 / 16 bf16 / 32 int8-fp8

    if vmem_budget_bytes is None:
        vmem_budget_bytes = _default_vmem_budget_bytes()

    # Triple-buffer streamed inputs only where there is headroom (v5e/v6e 128 MiB VMEM).
    in_buffers_hint = 3 if vmem_budget_bytes >= (64 << 20) else 2

    if tile_rows is None:
        tile_rows = _choose_tile_rows(rows, hidden, dtype_bytes, vmem_budget_bytes, pack,
                                      in_buffers_hint)
    tile_rows = min(tile_rows, rows)
    if tile_rows != rows and tile_rows % pack != 0:
        raise ValueError(f"tile_rows={tile_rows} must be a multiple of {pack} or equal rows")

    x2d = x1.reshape(rows, hidden)
    r2d = residual.reshape(rows, hidden)
    g2d = gamma.reshape(1, hidden)
    b2d = beta.reshape(1, hidden)

    grid_steps = -(-rows // tile_rows)                     # cdiv; partial last block is masked
    grid = (grid_steps,)

    use_triple = (in_buffers_hint == 3) and (grid_steps >= 4)
    in_buffers = 3 if use_triple else 2

    in_row_spec = _make_row_spec(tile_rows, hidden, use_triple)
    out_row_spec = pl.BlockSpec((tile_rows, hidden), lambda i: (i, 0))
    param_spec = pl.BlockSpec((1, hidden), lambda i: (0, 0))

    # VMEM footprint: 2 streamed inputs x in_buffers + output x 2 at the input dtype,
    # ~3 f32 intermediates, double-buffered params, plus 1 MiB slop.
    block_io = tile_rows * hidden * dtype_bytes
    block_f32 = tile_rows * hidden * 4
    est = (2 * in_buffers + 2) * block_io + 3 * block_f32 + 4 * hidden * 4 + (1 << 20)

    # Explicit limit is always passed (v5e default scoped limit is only 16 MiB). The estimate
    # is a hard floor so a hand-tuned tile_rows is never clamped below its own footprint.
    if est <= vmem_budget_bytes:
        vmem_limit = int(min(vmem_budget_bytes, max(est, 32 << 20)))
    else:
        vmem_limit = int(est)

    out = pl.pallas_call(
        _add_and_norm_kernel,
        out_shape=jax.ShapeDtypeStruct((rows, hidden), x1.dtype),
        grid_spec=pltpu.PrefetchScalarGridSpec(
            num_scalar_prefetch=0,
            grid=grid,
            in_specs=[in_row_spec, in_row_spec, param_spec, param_spec],
            out_specs=out_row_spec,
        ),
        compiler_params=pltpu.CompilerParams(
            # Row blocks are independent -> shardable across v7x's 2 TensorCores.
            # (pltpu.CORE_PARALLEL could be tried on v7x; "parallel" is portable.)
            dimension_semantics=("parallel",),
            vmem_limit_bytes=vmem_limit,
        ),
    )(x2d, r2d, g2d, b2d)

    return out.reshape(orig_shape)


def _reference(x1, residual, gamma, beta):
    s = x1 + residual
    mean = jnp.mean(s, axis=-1, keepdims=True)
    var = jnp.mean((s - mean) ** 2, axis=-1, keepdims=True)
    return (s - mean) * jax.lax.rsqrt(var + _LN_EPS) * gamma + beta


if __name__ == "__main__":
    key = jax.random.PRNGKey(0)

    # --- main demo: shapes implied by the module (batch, seq, hidden) ---
    batch, seq, hidden = 2, 8, 32
    k1, k2, k3, k4 = jax.random.split(key, 4)
    x1 = jax.random.normal(k1, (batch, seq, hidden), dtype=jnp.float32)
    residual = jax.random.normal(k2, (batch, seq, hidden), dtype=jnp.float32)
    # nn.LayerNorm deterministic default init: weight = 1, bias = 0.
    gamma = jnp.ones((hidden,), dtype=jnp.float32)
    beta = jnp.zeros((hidden,), dtype=jnp.float32)

    out = add_and_norm(x1, residual, gamma, beta)
    out = jax.block_until_ready(out)
    ref = _reference(x1, residual, gamma, beta)
    assert jnp.allclose(out, ref, atol=5e-5, rtol=1e-5), "mismatch vs reference (demo shape)"

    # --- second check: lane-dense hidden (multiple of 128) and a non-divisible row count,
    #     exercising the multi-step grid + masked partial last block path with an explicit tile. ---
    b2, s2, h2 = 3, 50, 128                                # rows = 150, tile = 64 -> grid = 3
    xa = jax.random.normal(k3, (b2, s2, h2), dtype=jnp.float32)
    xb = jax.random.normal(k4, (b2, s2, h2), dtype=jnp.float32)
    g2 = jnp.linspace(0.5, 1.5, h2, dtype=jnp.float32)
    bb2 = jnp.linspace(-0.1, 0.1, h2, dtype=jnp.float32)

    out2 = add_and_norm(xa, xb, g2, bb2, tile_rows=64)
    out2 = jax.block_until_ready(out2)
    ref2 = _reference(xa, xb, g2, bb2)
    assert jnp.allclose(out2, ref2, atol=5e-5, rtol=1e-5), "mismatch vs reference (tail-block case)"

    print("KERNEL_OK")
</pallas_src>

<mosaic_0001>
module attributes {stable_mosaic.version = 11 : i64} {
  func.func @_add_and_norm_kernel(%arg0: i32, %arg1: memref<16x32xf32, #tpu.memory_space<vmem>>, %arg2: memref<16x32xf32, #tpu.memory_space<vmem>>, %arg3: memref<1x32xf32, #tpu.memory_space<vmem>>, %arg4: memref<1x32xf32, #tpu.memory_space<vmem>>, %arg5: memref<16x32xf32, #tpu.memory_space<vmem>>) attributes {dimension_semantics = [#tpu.dimension_semantics<parallel>], iteration_bounds = array<i64: 1>, scalar_prefetch = 0 : i64, scratch_operands = 0 : i64, tpu.core_type = #tpu.core_type<tc>, window_params = [{transform_indices = @transform_0, window_bounds = array<i64: 16, 32>}, {transform_indices = @transform_1, window_bounds = array<i64: 16, 32>}, {pipeline_mode = #tpu.pipeline_mode<synchronous>, transform_indices = @transform_2, window_bounds = array<i64: 1, 32>}, {pipeline_mode = #tpu.pipeline_mode<synchronous>, transform_indices = @transform_3, window_bounds = array<i64: 1, 32>}, {transform_indices = @transform_4, window_bounds = array<i64: 16, 32>}]} {
    %c0 = arith.constant 0 : index
    %c0_0 = arith.constant 0 : index
    %0 = vector.load %arg1[%c0, %c0_0] : memref<16x32xf32, #tpu.memory_space<vmem>>, vector<16x32xf32>
    %c0_1 = arith.constant 0 : index
    %c0_2 = arith.constant 0 : index
    %1 = vector.load %arg2[%c0_1, %c0_2] : memref<16x32xf32, #tpu.memory_space<vmem>>, vector<16x32xf32>
    %2 = arith.addf %0, %1 : vector<16x32xf32>
    %cst = arith.constant dense<0.000000e+00> : vector<16xf32>
    %3 = vector.multi_reduction <add>, %2, %cst [1] : vector<16x32xf32> to vector<16xf32>
    %4 = vector.shape_cast %3 : vector<16xf32> to vector<16x1xf32>
    %cst_3 = arith.constant 3.200000e+01 : f32
    %5 = vector.broadcast %cst_3 : f32 to vector<16x1xf32>
    %6 = arith.divf %4, %5 : vector<16x1xf32>
    %7 = arith.mulf %2, %2 : vector<16x32xf32>
    %cst_4 = arith.constant dense<0.000000e+00> : vector<16xf32>
    %8 = vector.multi_reduction <add>, %7, %cst_4 [1] : vector<16x32xf32> to vector<16xf32>
    %9 = vector.shape_cast %8 : vector<16xf32> to vector<16x1xf32>
    %cst_5 = arith.constant 3.200000e+01 : f32
    %10 = vector.broadcast %cst_5 : f32 to vector<16x1xf32>
    %11 = arith.divf %9, %10 : vector<16x1xf32>
    %12 = arith.mulf %6, %6 : vector<16x1xf32>
    %13 = arith.subf %11, %12 : vector<16x1xf32>
    %cst_6 = arith.constant 0.000000e+00 : f32
    %14 = vector.broadcast %cst_6 : f32 to vector<16x1xf32>
    %15 = arith.maximumf %13, %14 : vector<16x1xf32>
    %cst_7 = arith.constant 9.99999974E-6 : f32
    %16 = vector.broadcast %cst_7 : f32 to vector<16x1xf32>
    %17 = arith.addf %15, %16 : vector<16x1xf32>
    %18 = math.rsqrt %17 : vector<16x1xf32>
    %c0_8 = arith.constant 0 : index
    %c0_9 = arith.constant 0 : index
    %19 = vector.load %arg3[%c0_8, %c0_9] : memref<1x32xf32, #tpu.memory_space<vmem>>, vector<1x32xf32>
    %c0_10 = arith.constant 0 : index
    %c0_11 = arith.constant 0 : index
    %20 = vector.load %arg4[%c0_10, %c0_11] : memref<1x32xf32, #tpu.memory_space<vmem>>, vector<1x32xf32>
    %21 = vector.broadcast %6 : vector<16x1xf32> to vector<16x32xf32>
    %22 = arith.subf %2, %21 : vector<16x32xf32>
    %23 = vector.broadcast %18 : vector<16x1xf32> to vector<16x32xf32>
    %24 = arith.mulf %22, %23 : vector<16x32xf32>
    %25 = vector.broadcast %19 : vector<1x32xf32> to vector<16x32xf32>
    %26 = arith.mulf %24, %25 : vector<16x32xf32>
    %27 = vector.broadcast %20 : vector<1x32xf32> to vector<16x32xf32>
    %28 = arith.addf %26, %27 : vector<16x32xf32>
    %c0_12 = arith.constant 0 : index
    %c0_13 = arith.constant 0 : index
    %29 = vector.load %arg5[%c0_12, %c0_13] : memref<16x32xf32, #tpu.memory_space<vmem>>, vector<16x32xf32>
    tpu.vector_store %arg5[%c0_12, %c0_13], %28 {strides = array<i32>} : memref<16x32xf32, #tpu.memory_space<vmem>>, vector<16x32xf32>,
    return
  }
  func.func @transform_0(%arg0: i32) -> (i32, i32) {
    %c0_i32 = arith.constant 0 : i32
    %c0_i32_0 = arith.constant 0 : i32
    return %arg0, %c0_i32 : i32, i32
  }
  func.func @transform_1(%arg0: i32) -> (i32, i32) {
    %c0_i32 = arith.constant 0 : i32
    %c0_i32_0 = arith.constant 0 : i32
    return %arg0, %c0_i32 : i32, i32
  }
  func.func @transform_2(%arg0: i32) -> (i32, i32) {
    %c0_i32 = arith.constant 0 : i32
    %c0_i32_0 = arith.constant 0 : i32
    %c0_i32_1 = arith.constant 0 : i32
    return %c0_i32, %c0_i32_0 : i32, i32
  }
  func.func @transform_3(%arg0: i32) -> (i32, i32) {
    %c0_i32 = arith.constant 0 : i32
    %c0_i32_0 = arith.constant 0 : i32
    %c0_i32_1 = arith.constant 0 : i32
    return %c0_i32, %c0_i32_0 : i32, i32
  }
  func.func @transform_4(%arg0: i32) -> (i32, i32) {
    %c0_i32 = arith.constant 0 : i32
    %c0_i32_0 = arith.constant 0 : i32
    return %arg0, %c0_i32 : i32, i32
  }
}

</mosaic_0001>

<llo_original>
// kernel: tpu_custom_call.1
$region0: #{tpu_custom_call.1}
  #allocation0 [shape = 'u32[]', space=smem, size = 0x4, offset = 0x4, fixed_abs, tag = 'smem constant byte address 0x4 - core index']
  #allocation1 [shape = 'u32[144,128]{1,0:T(1,128)}', space=vmem, size = 0x12000, scoped, tag = 'internal scratch']
  %s0 = inlined_call_operand.hbm [shape: f32[16,32], index: 0, kind: input, shape index: {}]
  %s1 = inlined_call_operand.hbm [shape: f32[16,32], index: 1, kind: input, shape index: {}]
  %s2 = inlined_call_operand.vmem [shape: f32[1,32], index: 2, kind: input, shape index: {}]
  %s3 = inlined_call_operand.vmem [shape: f32[1,32], index: 3, kind: input, shape index: {}]
  %s4 = inlined_call_operand.hbm [shape: f32[16,32], index: 4, kind: output, shape index: {}]
  %s5 = sld [smem:[#allocation0]]
  $region34: #{tpu_custom_call.1} parent=0
    _
  %s7 = ssub.s32 1, %s5
  %s8 = scalar_select 0, %s7, %s5
  $region1: #{tpu_custom_call.1} parent=0
    #allocation2 [shape = 'u8[8192]{0}', space=vmem, size = 0x2000, scoped, tag = 'input window, operand 0, single buffered']
    #allocation3 [shape = 's32[1]{0}', space=sflag, size = 0x4, scoped, tag = 'scoped memory for tpu_custom_call.1']
    #allocation4 [shape = 's32[1]{0}', space=sflag, size = 0x4, scoped, tag = 'scoped memory for tpu_custom_call.1']
    #allocation5 [shape = 'u8[8192]{0}', space=vmem, size = 0x2000, scoped, tag = 'input window, operand 1, single buffered']
    #allocation6 [shape = 's32[1]{0}', space=sflag, size = 0x4, scoped, tag = 'scoped memory for tpu_custom_call.1']
    #allocation7 [shape = 'u8[8192]{0}', space=vmem, size = 0x2000, scoped, tag = 'output window, operand 0, single buffered']
    %9 = vsyncpa [#allocation3], 0
    %10 = vsyncpa [#allocation6], 0
    %11 = vsyncpa [#allocation4], 0
    // Predicated region
    $region2: #{tpu_custom_call.1} parent=1 // pred_check
      _
    $region3: #{tpu_custom_call.1} parent=1 // pred_check_branch
      %13 = sbr.rel (0) target = $region5
    $region4: #{tpu_custom_call.1} parent=1 // pred_region
      %s15 = ssub.s32 256, 256
      %16 = vsyncadd [#allocation3], %s15
      %s17 = sshll.u32 [#allocation2], 4
      %s18 = int_to_ptr.vmem [resolvable:$true] %s17
      %23 = dma.hbm_to_vmem [thread:$0]  %s0, 256, %s18, [#allocation3], 128, 128, 8
    $region5: #{tpu_custom_call.1} parent=1 // pred_fallthru
      _
    // Predicated region
    $region6: #{tpu_custom_call.1} parent=1 // pred_check
      _
    $region7: #{tpu_custom_call.1} parent=1 // pred_check_branch
      %25 = sbr.rel (0) target = $region9
    $region8: #{tpu_custom_call.1} parent=1 // pred_region
      %s27 = ssub.s32 256, 256
      %28 = vsyncadd [#allocation6], %s27
      %s29 = sshll.u32 [#allocation5], 4
      %s30 = int_to_ptr.vmem [resolvable:$true] %s29
      %35 = dma.hbm_to_vmem [thread:$0]  %s1, 256, %s30, [#allocation6], 128, 128, 8
    $region9: #{tpu_custom_call.1} parent=1 // pred_fallthru
      _
    // Predicated region
    $region10: #{tpu_custom_call.1} parent=1 // pred_check
      _
    $region11: #{tpu_custom_call.1} parent=1 // pred_check_branch
      %37 = sbr.rel (0) target = $region13
    $region12: #{tpu_custom_call.1} parent=1 // pred_region
      _
    $region13: #{tpu_custom_call.1} parent=1 // pred_fallthru
      _
    // Predicated region
    $region14: #{tpu_custom_call.1} parent=1 // pred_check
      _
    $region15: #{tpu_custom_call.1} parent=1 // pred_check_branch
      %39 = sbr.rel (0) target = $region17
    $region16: #{tpu_custom_call.1} parent=1 // pred_region
      _
    $region17: #{tpu_custom_call.1} parent=1 // pred_fallthru
      _
    // Predicated region
    $region18: #{tpu_custom_call.1} parent=1 // pred_check
      _
    $region19: #{tpu_custom_call.1} parent=1 // pred_check_branch
      %41 = sbr.rel (0) target = $region21
    $region20: #{tpu_custom_call.1} parent=1 // pred_region
      %42 = dma.done [#allocation3], 256
    $region21: #{tpu_custom_call.1} parent=1 // pred_fallthru
      _
    // Predicated region
    $region22: #{tpu_custom_call.1} parent=1 // pred_check
      _
    $region23: #{tpu_custom_call.1} parent=1 // pred_check_branch
      %44 = sbr.rel (0) target = $region25
    $region24: #{tpu_custom_call.1} parent=1 // pred_region
      %45 = dma.done [#allocation6], 256
    $region25: #{tpu_custom_call.1} parent=1 // pred_fallthru
      _
    %v46 = vld [vmem:[#allocation2] sm:$0xff]
    %v47 = vld [vmem:[#allocation2 + $0x8] sm:$0xff]
    %v48 = vld [vmem:[#allocation5] sm:$0xff]
    %v49 = vld [vmem:[#allocation5 + $0x8] sm:$0xff]
    %v50 = vadd.f32 %v46, %v48
    %v51 = vadd.f32 %v47, %v49
    %vm52 = vcmask 261120
    %v53 = vsel %vm52, %v50, 0.0
    %54 = vadd.xlane.f32.xlu0 %v53
    %v55 = vpop.xlane.xlu0 %54
    %v56 = vsel %vm52, %v51, 0.0
    %57 = vadd.xlane.f32.xlu0 %v56
    %v58 = vpop.xlane.xlu0 %57
    %v59 = vrcp.pop 32.0
    %v60 = vmul.f32 %v55, %v59
    %v61 = vmul.f32 %v58, %v59
    %v62 = vmul.f32 %v50, %v50
    %v63 = vmul.f32 %v51, %v51
    %v64 = vsel %vm52, %v62, 0.0
    %65 = vadd.xlane.f32.xlu0 %v64
    %v66 = vpop.xlane.xlu0 %65
    %v67 = vsel %vm52, %v63, 0.0
    %68 = vadd.xlane.f32.xlu0 %v67
    %v69 = vpop.xlane.xlu0 %68
    %v70 = vmul.f32 %v66, %v59
    %v71 = vmul.f32 %v69, %v59
    %v72 = vmul.f32 %v60, %v60
    %v73 = vmul.f32 %v61, %v61
    %v74 = vsub.f32 %v70, %v72
    %v75 = vsub.f32 %v71, %v73
    %v76 = vmax.f32 %v74, 0.0
    %v77 = vmax.f32 %v75, 0.0
    %v78 = vadd.f32 %v76, 1e-05
    %v79 = vadd.f32 %v77, 1e-05
    %v80 = vrsqrt.pop %v78
    %v81 = vrsqrt.pop %v79
    %v82 = vld [vmem:[%s2] sm:$0x1]
    %v83 = vld [vmem:[%s3] sm:$0x1]
    %v84 = vsub.f32 %v50, %v60
    %v85 = vsub.f32 %v51, %v61
    %v86 = vmul.f32 %v84, %v80
    %v87 = vmul.f32 %v85, %v81
    %v89 = vlaneseq
    %v90 = vshrl.u32 %v89, 7
    %v91 = vsub.s32 0, %v90
    %v92 = vrot.slane %v82, %v91
    %v94 = vmul.f32 %v86, %v92
    %v95 = vmul.f32 %v87, %v92
    %v97 = vlaneseq
    %v98 = vshrl.u32 %v97, 7
    %v99 = vsub.s32 0, %v98
    %v100 = vrot.slane %v83, %v99
    %v102 = vadd.f32 %v94, %v100
    %v103 = vadd.f32 %v95, %v100
    %104 = vst.msk [vmem:[#allocation7] sm:$0xff] %vm52, %v102
    %105 = vst.msk [vmem:[#allocation7 + $0x8] sm:$0xff] %vm52, %v103
    // Predicated region
    $region26: #{tpu_custom_call.1} parent=1 // pred_check
      _
    $region27: #{tpu_custom_call.1} parent=1 // pred_check_branch
      %107 = sbr.rel (0) target = $region29
    $region28: #{tpu_custom_call.1} parent=1 // pred_region
      %s109 = ssub.s32 256, 256
      %110 = vsyncadd [#allocation4], %s109
      %s111 = sshll.u32 [#allocation7], 4
      %s112 = int_to_ptr.vmem [resolvable:$true] %s111
      %117 = dma.vmem_to_hbm [thread:$0]  %s112, 256, %s4, [#allocation4], 128, 128, 8
    $region29: #{tpu_custom_call.1} parent=1 // pred_fallthru
      _
    // Predicated region
    $region30: #{tpu_custom_call.1} parent=1 // pred_check
      _
    $region31: #{tpu_custom_call.1} parent=1 // pred_check_branch
      %119 = sbr.rel (0) target = $region33
    $region32: #{tpu_custom_call.1} parent=1 // pred_region
      %120 = dma.done [#allocation4], 256
    $region33: #{tpu_custom_call.1} parent=1 // pred_fallthru
      _
    %121 = vsyncpa [#allocation3], 1
    %122 = vsyncpa [#allocation6], 1
    %123 = vsyncpa [#allocation4], 1

</llo_original>
